<compile_context>
chip_gen: v6e
topology: v6e:2x2x1
jax: 0.10.0
libtpu: 0.0.40
codegen_flags: <defaults>
</compile_context>

<pallas_src>
import math
import jax
import jax.numpy as jnp
from jax.experimental import pallas as pl
from jax.experimental.pallas import tpu as pltpu

# HardConcreteSampler constants (from the PyTorch source)
ZETA, GAMMA, BETA = 1.1, -0.1, 2.0 / 3.0
GAMMA_ZETA_RATIO = -GAMMA / ZETA      # source: gamma_zeta_logratio = -gamma/zeta (a RATIO)
INV_BETA = 1.0 / BETA
# ConcreteSampler temperature
TEMPERATURE = 0.9
INV_TEMPERATURE = 1.0 / TEMPERATURE
LOG_MIN = math.log(0.01)
LOG_MAX = math.log(100.0)


def _spike_and_slab_kernel(
    eps_ref, lw_ref, lz_ref,                  # [tr, tp] noise: N(0,1), Logistic(0,1) x2
    std_ref, mu_ref, la_w_ref, la_z_ref,      # [1, tp] per-feature parameters
    out_ref, signed_ref, weight_ref, z_ref,   # [tr, tp] outputs
):
    # --- LogNormalSampler: theta = exp(std * eps + mu), std = exp(logstd) hoisted ---
    theta = jnp.exp(std_ref[...] * eps_ref[...] + mu_ref[...])

    # --- ConcreteSampler (training path): logit(u) arrives as Logistic(0,1) noise ---
    weight = jax.nn.sigmoid((lw_ref[...] + la_w_ref[...]) * INV_TEMPERATURE)

    # --- HardConcreteSampler (training path) ---
    s_z = jax.nn.sigmoid((lz_ref[...] + la_z_ref[...]) * INV_BETA)
    z = jnp.clip((ZETA - GAMMA) * s_z + GAMMA, 0.0, 1.0)

    # --- combine: weight*theta + (1-weight)*(-theta) == (2*weight - 1)*theta ---
    signed_theta = (2.0 * weight - 1.0) * theta

    out_ref[...] = (z * signed_theta).astype(out_ref.dtype)
    signed_ref[...] = signed_theta.astype(signed_ref.dtype)
    weight_ref[...] = weight.astype(weight_ref.dtype)
    z_ref[...] = z.astype(z_ref.dtype)


def _round_up(x, m):
    return ((x + m - 1) // m) * m


def _largest_aligned_divisor(total, align, cap):
    """Largest multiple of `align` that divides `total` and is <= cap.
    `total` must itself be a multiple of `align` (so `align` always qualifies)."""
    cap = max(align, min(cap, total))
    t = cap - (cap % align)
    while t > align:
        if total % t == 0:
            return t
        t -= align
    return align


def _device_defaults():
    """(tile_r pref, tile_p pref, vmem_limit_bytes) per TPU generation."""
    try:
        kind = jax.devices()[0].device_kind.lower()
    except Exception:
        kind = ""
    if "v5" in kind or "v6" in kind:
        # 128 MiB physical VMEM parts: bigger tiles amortize per-step overhead.
        return 1024, 1024, 96 << 20
    # v7x (64 MiB physical VMEM) and unknown parts: conservative budget.
    return 512, 1024, 48 << 20


def spike_and_slab_forward(eps, logistic_w, logistic_z, mu, logstd,
                           logalpha_w, logalpha_z, *,
                           tile_r=None, tile_p=None, vmem_limit_bytes=None,
                           gate_dtype=jnp.bfloat16):
    """Pallas forward for SpikeAndSlabSampler (training mode).

    eps                     : [repeat, p] f32 N(0,1) draws
    logistic_w, logistic_z  : [repeat, p] f32 Logistic(0,1) draws (== logit(U(0,1)))
    mu, logstd, logalpha_*  : [1, p] f32 per-feature parameters
    gate_dtype              : storage dtype for the bounded gates `weight`, `z`
                              (bfloat16 default cuts HBM store traffic ~14%).
    """
    repeat, p = eps.shape
    dr, dp, dv = _device_defaults()
    tile_r = dr if tile_r is None else tile_r
    tile_p = dp if tile_p is None else tile_p
    vmem_limit_bytes = dv if vmem_limit_bytes is None else vmem_limit_bytes

    # Pad to (8,128)-aligned extents so every output tile is lane-dense
    # (unmasked stores) and block shapes always satisfy the (8,128) constraint.
    r_pad = _round_up(repeat, 8)
    p_pad = _round_up(p, 128)

    tr = _largest_aligned_divisor(r_pad, 8, tile_r)
    tp = _largest_aligned_divisor(p_pad, 128, tile_p)
    # v7x megacore: make sure at least one parallel grid axis has >= 2 steps.
    if (r_pad // tr) * (p_pad // tp) == 1:
        if r_pad >= 16:
            tr = _largest_aligned_divisor(r_pad, 8, r_pad // 2)
        elif p_pad >= 256:
            tp = _largest_aligned_divisor(p_pad, 128, p_pad // 2)
    n_r, n_p = r_pad // tr, p_pad // tp

    std = jnp.exp(logstd)   # hoisted EUP work (single [1, p] row)

    needs_pad = (r_pad, p_pad) != (repeat, p)
    if needs_pad:
        pad_rp = lambda a: jnp.pad(a, ((0, r_pad - a.shape[0]), (0, p_pad - a.shape[1])))
        pad_row = lambda a: jnp.pad(a, ((0, 0), (0, p_pad - a.shape[1])))
        eps_k, lw_k, lz_k = pad_rp(eps), pad_rp(logistic_w), pad_rp(logistic_z)
        std_k, mu_k = pad_row(std), pad_row(mu)
        la_w_k, la_z_k = pad_row(logalpha_w), pad_row(logalpha_z)
    else:
        eps_k, lw_k, lz_k = eps, logistic_w, logistic_z
        std_k, mu_k, la_w_k, la_z_k = std, mu, logalpha_w, logalpha_z

    # Grid is (p-tiles, repeat-tiles): the inner (last) axis walks repeat tiles,
    # so the [1, tp] parameter rows keep a constant block index across it and
    # are not re-DMA'd every grid step.
    rp_spec = pl.BlockSpec((tr, tp), lambda jp, ir: (ir, jp))
    row_spec = pl.BlockSpec((1, tp), lambda jp, ir: (0, jp))

    out, signed_theta, weight, z = pl.pallas_call(
        _spike_and_slab_kernel,
        out_shape=(
            jax.ShapeDtypeStruct((r_pad, p_pad), jnp.float32),   # out
            jax.ShapeDtypeStruct((r_pad, p_pad), jnp.float32),   # signed_theta
            jax.ShapeDtypeStruct((r_pad, p_pad), gate_dtype),    # weight in [0,1]
            jax.ShapeDtypeStruct((r_pad, p_pad), gate_dtype),    # z in [0,1]
        ),
        grid_spec=pltpu.PrefetchScalarGridSpec(
            num_scalar_prefetch=0,
            grid=(n_p, n_r),
            in_specs=[rp_spec, rp_spec, rp_spec,
                      row_spec, row_spec, row_spec, row_spec],
            out_specs=[rp_spec, rp_spec, rp_spec, rp_spec],
        ),
        compiler_params=pltpu.CompilerParams(
            dimension_semantics=("parallel", "parallel"),
            vmem_limit_bytes=vmem_limit_bytes,
        ),
    )(eps_k, lw_k, lz_k, std_k, mu_k, la_w_k, la_z_k)

    if needs_pad:
        out = out[:repeat, :p]
        signed_theta = signed_theta[:repeat, :p]
        weight = weight[:repeat, :p]
        z = z[:repeat, :p]

    # [1, p]-only outputs (per-feature, cheap) stay in plain XLA; keeping them
    # in-kernel would recompute/re-store them for every repeat tile.
    logstd_clamped = jnp.clip(logstd, LOG_MIN, LOG_MAX)
    qz = jax.nn.sigmoid(logalpha_z - BETA * GAMMA_ZETA_RATIO)

    # epsilon / mu are pass-throughs; mu/logstd/qz returned per-feature like PyTorch.
    return (out, signed_theta, eps, mu[0], logstd_clamped[0], weight, z, qz[0])


if __name__ == "__main__":
    # Small demo shapes; p=500 is deliberately NOT a multiple of 128 to exercise
    # the lane-padding path, and explicit small tile prefs force a 2x2 grid.
    # TODO(synk): at single-vreg production sizes, plain XLA fusion is preferable
    # to a pallas_call (fixed launch/DMA overhead dominates).
    repeat, p = 64, 500
    key = jax.random.PRNGKey(0)

    # Deterministic parameter init (matches module __init__)
    mu = 0.2 * jnp.ones((1, p), jnp.float32)
    logstd = 0.01 * jnp.ones((1, p), jnp.float32)
    logalpha_w = jnp.ones((1, p), jnp.float32)   # ConcreteSampler.logalpha
    logalpha_z = jnp.ones((1, p), jnp.float32)   # HardConcreteSampler.logalpha

    # RNG draws kept outside the kernel.  logit(U(0,1)) ~ Logistic(0,1), so the
    # Concrete/HardConcrete noise is sampled directly as logistic noise.
    k_eps, k_lw, k_lz = jax.random.split(key, 3)
    eps = jax.random.normal(k_eps, (repeat, p), jnp.float32)
    l_w = jax.random.logistic(k_lw, (repeat, p), jnp.float32)
    l_z = jax.random.logistic(k_lz, (repeat, p), jnp.float32)

    results = spike_and_slab_forward(
        eps, l_w, l_z, mu, logstd, logalpha_w, logalpha_z,
        tile_r=32, tile_p=256,   # -> grid (2, 2) at this demo size
    )
    results = jax.block_until_ready(results)
    out, signed_theta, eps_out, mu_out, logstd_out, weight, z, qz = results

    # shape checks
    assert out.shape == (repeat, p) and signed_theta.shape == (repeat, p)
    assert eps_out.shape == (repeat, p) and weight.shape == (repeat, p) and z.shape == (repeat, p)
    assert mu_out.shape == (p,) and logstd_out.shape == (p,) and qz.shape == (p,)

    # plain-JAX reference (exact forward of the PyTorch module, training mode)
    theta_ref = jnp.exp(jnp.exp(logstd) * eps + mu)
    w_ref = jax.nn.sigmoid((l_w + logalpha_w) / TEMPERATURE)
    s_ref = jax.nn.sigmoid((l_z + logalpha_z) / BETA)
    z_ref = jnp.clip((ZETA - GAMMA) * s_ref + GAMMA, 0.0, 1.0)
    signed_ref = w_ref * theta_ref + (1.0 - w_ref) * (-theta_ref)
    out_ref_v = z_ref * signed_ref
    qz_ref = jax.nn.sigmoid(logalpha_z - BETA * GAMMA_ZETA_RATIO)[0]
    logstd_ref = jnp.clip(logstd, LOG_MIN, LOG_MAX)[0]

    # f32 streams: only ulp-level differences (mul-by-reciprocal constants, refactored combine)
    assert jnp.allclose(signed_theta, signed_ref, rtol=1e-4, atol=1e-3)
    assert jnp.allclose(out, out_ref_v, rtol=1e-4, atol=1e-3)
    # gates are stored as bf16 (bounded in [0,1]) -> ~0.4% storage rounding
    assert jnp.allclose(weight.astype(jnp.float32), w_ref, rtol=1e-2, atol=5e-3)
    assert jnp.allclose(z.astype(jnp.float32), z_ref, rtol=1e-2, atol=5e-3)
    # per-feature outputs computed in XLA
    assert jnp.allclose(qz, qz_ref, rtol=1e-6, atol=1e-6)
    assert jnp.allclose(logstd_out, logstd_ref, rtol=1e-6, atol=1e-6)
    assert jnp.array_equal(eps_out, eps) and jnp.array_equal(mu_out, mu[0])

    print("KERNEL_OK")
</pallas_src>

<mosaic_0001>
module attributes {stable_mosaic.version = 11 : i64} {
  func.func @_spike_and_slab_kernel(%arg0: i32, %arg1: i32, %arg2: memref<32x256xf32, #tpu.memory_space<vmem>>, %arg3: memref<32x256xf32, #tpu.memory_space<vmem>>, %arg4: memref<32x256xf32, #tpu.memory_space<vmem>>, %arg5: memref<1x256xf32, #tpu.memory_space<vmem>>, %arg6: memref<1x256xf32, #tpu.memory_space<vmem>>, %arg7: memref<1x256xf32, #tpu.memory_space<vmem>>, %arg8: memref<1x256xf32, #tpu.memory_space<vmem>>, %arg9: memref<32x256xf32, #tpu.memory_space<vmem>>, %arg10: memref<32x256xf32, #tpu.memory_space<vmem>>, %arg11: memref<32x256xbf16, #tpu.memory_space<vmem>>, %arg12: memref<32x256xbf16, #tpu.memory_space<vmem>>) attributes {dimension_semantics = [#tpu.dimension_semantics<parallel>, #tpu.dimension_semantics<parallel>], iteration_bounds = array<i64: 2, 2>, scalar_prefetch = 0 : i64, scratch_operands = 0 : i64, tpu.core_type = #tpu.core_type<tc>, window_params = [{transform_indices = @transform_0, window_bounds = array<i64: 32, 256>}, {transform_indices = @transform_1, window_bounds = array<i64: 32, 256>}, {transform_indices = @transform_2, window_bounds = array<i64: 32, 256>}, {transform_indices = @transform_3, window_bounds = array<i64: 1, 256>}, {transform_indices = @transform_4, window_bounds = array<i64: 1, 256>}, {transform_indices = @transform_5, window_bounds = array<i64: 1, 256>}, {transform_indices = @transform_6, window_bounds = array<i64: 1, 256>}, {transform_indices = @transform_7, window_bounds = array<i64: 32, 256>}, {transform_indices = @transform_8, window_bounds = array<i64: 32, 256>}, {transform_indices = @transform_9, window_bounds = array<i64: 32, 256>}, {transform_indices = @transform_10, window_bounds = array<i64: 32, 256>}]} {
    %c0 = arith.constant 0 : index
    %c0_0 = arith.constant 0 : index
    %0 = vector.load %arg5[%c0, %c0_0] : memref<1x256xf32, #tpu.memory_space<vmem>>, vector<1x256xf32>
    %c0_1 = arith.constant 0 : index
    %c0_2 = arith.constant 0 : index
    %1 = vector.load %arg2[%c0_1, %c0_2] : memref<32x256xf32, #tpu.memory_space<vmem>>, vector<32x256xf32>
    %2 = vector.broadcast %0 : vector<1x256xf32> to vector<32x256xf32>
    %3 = arith.mulf %2, %1 : vector<32x256xf32>
    %c0_3 = arith.constant 0 : index
    %c0_4 = arith.constant 0 : index
    %4 = vector.load %arg6[%c0_3, %c0_4] : memref<1x256xf32, #tpu.memory_space<vmem>>, vector<1x256xf32>
    %5 = vector.broadcast %4 : vector<1x256xf32> to vector<32x256xf32>
    %6 = arith.addf %3, %5 : vector<32x256xf32>
    %7 = math.exp %6 : vector<32x256xf32>
    %c0_5 = arith.constant 0 : index
    %c0_6 = arith.constant 0 : index
    %8 = vector.load %arg3[%c0_5, %c0_6] : memref<32x256xf32, #tpu.memory_space<vmem>>, vector<32x256xf32>
    %c0_7 = arith.constant 0 : index
    %c0_8 = arith.constant 0 : index
    %9 = vector.load %arg7[%c0_7, %c0_8] : memref<1x256xf32, #tpu.memory_space<vmem>>, vector<1x256xf32>
    %10 = vector.broadcast %9 : vector<1x256xf32> to vector<32x256xf32>
    %11 = arith.addf %8, %10 : vector<32x256xf32>
    %cst = arith.constant 1.11111116 : f32
    %12 = vector.broadcast %cst : f32 to vector<32x256xf32>
    %13 = arith.mulf %11, %12 : vector<32x256xf32>
    %14 = arith.negf %13 : vector<32x256xf32>
    %15 = math.exp %14 : vector<32x256xf32>
    %cst_9 = arith.constant 1.000000e+00 : f32
    %16 = vector.broadcast %cst_9 : f32 to vector<32x256xf32>
    %17 = arith.addf %16, %15 : vector<32x256xf32>
    %18 = arith.divf %16, %17 : vector<32x256xf32>
    %c0_10 = arith.constant 0 : index
    %c0_11 = arith.constant 0 : index
    %19 = vector.load %arg4[%c0_10, %c0_11] : memref<32x256xf32, #tpu.memory_space<vmem>>, vector<32x256xf32>
    %c0_12 = arith.constant 0 : index
    %c0_13 = arith.constant 0 : index
    %20 = vector.load %arg8[%c0_12, %c0_13] : memref<1x256xf32, #tpu.memory_space<vmem>>, vector<1x256xf32>
    %21 = vector.broadcast %20 : vector<1x256xf32> to vector<32x256xf32>
    %22 = arith.addf %19, %21 : vector<32x256xf32>
    %cst_14 = arith.constant 1.500000e+00 : f32
    %23 = vector.broadcast %cst_14 : f32 to vector<32x256xf32>
    %24 = arith.mulf %22, %23 : vector<32x256xf32>
    %25 = arith.negf %24 : vector<32x256xf32>
    %26 = math.exp %25 : vector<32x256xf32>
    %cst_15 = arith.constant 1.000000e+00 : f32
    %27 = vector.broadcast %cst_15 : f32 to vector<32x256xf32>
    %28 = arith.addf %27, %26 : vector<32x256xf32>
    %29 = arith.divf %27, %28 : vector<32x256xf32>
    %cst_16 = arith.constant 1.200000e+00 : f32
    %30 = vector.broadcast %cst_16 : f32 to vector<32x256xf32>
    %31 = arith.mulf %30, %29 : vector<32x256xf32>
    %cst_17 = arith.constant -1.000000e-01 : f32
    %32 = vector.broadcast %cst_17 : f32 to vector<32x256xf32>
    %33 = arith.addf %31, %32 : vector<32x256xf32>
    %cst_18 = arith.constant 0.000000e+00 : f32
    %cst_19 = arith.constant 1.000000e+00 : f32
    %34 = vector.broadcast %cst_18 : f32 to vector<32x256xf32>
    %35 = arith.maximumf %34, %33 : vector<32x256xf32>
    %36 = vector.broadcast %cst_19 : f32 to vector<32x256xf32>
    %37 = arith.minimumf %36, %35 : vector<32x256xf32>
    %cst_20 = arith.constant 2.000000e+00 : f32
    %38 = vector.broadcast %cst_20 : f32 to vector<32x256xf32>
    %39 = arith.mulf %38, %18 : vector<32x256xf32>
    %cst_21 = arith.constant 1.000000e+00 : f32
    %40 = vector.broadcast %cst_21 : f32 to vector<32x256xf32>
    %41 = arith.subf %39, %40 : vector<32x256xf32>
    %42 = arith.mulf %41, %7 : vector<32x256xf32>
    %43 = arith.mulf %37, %42 : vector<32x256xf32>
    %c0_22 = arith.constant 0 : index
    %c0_23 = arith.constant 0 : index
    %44 = vector.load %arg9[%c0_22, %c0_23] : memref<32x256xf32, #tpu.memory_space<vmem>>, vector<32x256xf32>
    tpu.vector_store %arg9[%c0_22, %c0_23], %43 {strides = array<i32>} : memref<32x256xf32, #tpu.memory_space<vmem>>, vector<32x256xf32>,
    %c0_24 = arith.constant 0 : index
    %c0_25 = arith.constant 0 : index
    %45 = vector.load %arg10[%c0_24, %c0_25] : memref<32x256xf32, #tpu.memory_space<vmem>>, vector<32x256xf32>
    tpu.vector_store %arg10[%c0_24, %c0_25], %42 {strides = array<i32>} : memref<32x256xf32, #tpu.memory_space<vmem>>, vector<32x256xf32>,
    %46 = arith.truncf %18 : vector<32x256xf32> to vector<32x256xbf16>
    %c0_26 = arith.constant 0 : index
    %c0_27 = arith.constant 0 : index
    %47 = vector.load %arg11[%c0_26, %c0_27] : memref<32x256xbf16, #tpu.memory_space<vmem>>, vector<32x256xbf16>
    tpu.vector_store %arg11[%c0_26, %c0_27], %46 {strides = array<i32>} : memref<32x256xbf16, #tpu.memory_space<vmem>>, vector<32x256xbf16>,
    %48 = arith.truncf %37 : vector<32x256xf32> to vector<32x256xbf16>
    %c0_28 = arith.constant 0 : index
    %c0_29 = arith.constant 0 : index
    %49 = vector.load %arg12[%c0_28, %c0_29] : memref<32x256xbf16, #tpu.memory_space<vmem>>, vector<32x256xbf16>
    tpu.vector_store %arg12[%c0_28, %c0_29], %48 {strides = array<i32>} : memref<32x256xbf16, #tpu.memory_space<vmem>>, vector<32x256xbf16>,
    return
  }
  func.func @transform_0(%arg0: i32, %arg1: i32) -> (i32, i32) {
    %c0_i32 = arith.constant 0 : i32
    return %arg1, %arg0 : i32, i32
  }
  func.func @transform_1(%arg0: i32, %arg1: i32) -> (i32, i32) {
    %c0_i32 = arith.constant 0 : i32
    return %arg1, %arg0 : i32, i32
  }
  func.func @transform_2(%arg0: i32, %arg1: i32) -> (i32, i32) {
    %c0_i32 = arith.constant 0 : i32
    return %arg1, %arg0 : i32, i32
  }
  func.func @transform_3(%arg0: i32, %arg1: i32) -> (i32, i32) {
    %c0_i32 = arith.constant 0 : i32
    %c0_i32_0 = arith.constant 0 : i32
    return %c0_i32, %arg0 : i32, i32
  }
  func.func @transform_4(%arg0: i32, %arg1: i32) -> (i32, i32) {
    %c0_i32 = arith.constant 0 : i32
    %c0_i32_0 = arith.constant 0 : i32
    return %c0_i32, %arg0 : i32, i32
  }
  func.func @transform_5(%arg0: i32, %arg1: i32) -> (i32, i32) {
    %c0_i32 = arith.constant 0 : i32
    %c0_i32_0 = arith.constant 0 : i32
    return %c0_i32, %arg0 : i32, i32
  }
  func.func @transform_6(%arg0: i32, %arg1: i32) -> (i32, i32) {
    %c0_i32 = arith.constant 0 : i32
    %c0_i32_0 = arith.constant 0 : i32
    return %c0_i32, %arg0 : i32, i32
  }
  func.func @transform_7(%arg0: i32, %arg1: i32) -> (i32, i32) {
    %c0_i32 = arith.constant 0 : i32
    return %arg1, %arg0 : i32, i32
  }
  func.func @transform_8(%arg0: i32, %arg1: i32) -> (i32, i32) {
    %c0_i32 = arith.constant 0 : i32
    return %arg1, %arg0 : i32, i32
  }
  func.func @transform_9(%arg0: i32, %arg1: i32) -> (i32, i32) {
    %c0_i32 = arith.constant 0 : i32
    return %arg1, %arg0 : i32, i32
  }
  func.func @transform_10(%arg0: i32, %arg1: i32) -> (i32, i32) {
    %c0_i32 = arith.constant 0 : i32
    return %arg1, %arg0 : i32, i32
  }
}

</mosaic_0001>

<llo_original>
// kernel: tpu_custom_call.1
$region0: #{tpu_custom_call.1}
  #allocation0 [shape = 'u32[]', space=smem, size = 0x4, offset = 0x4, fixed_abs, tag = 'smem constant byte address 0x4 - core index']
  #allocation1 [shape = 'u32[144,128]{1,0:T(1,128)}', space=vmem, size = 0x12000, scoped, tag = 'internal scratch']
  %s0 = inlined_call_operand.hbm [shape: f32[64,512], index: 0, kind: input, shape index: {}]
  %s1 = inlined_call_operand.hbm [shape: f32[64,512], index: 1, kind: input, shape index: {}]
  %s2 = inlined_call_operand.hbm [shape: f32[64,512], index: 2, kind: input, shape index: {}]
  %s3 = inlined_call_operand.vmem [shape: f32[1,512], index: 3, kind: input, shape index: {}]
  %s4 = inlined_call_operand.hbm [shape: f32[1,512], index: 4, kind: input, shape index: {}]
  %s5 = inlined_call_operand.vmem [shape: f32[1,512], index: 5, kind: input, shape index: {}]
  %s6 = inlined_call_operand.hbm [shape: f32[1,512], index: 6, kind: input, shape index: {}]
  %s7 = inlined_call_operand.hbm [shape: f32[64,512], index: 7, kind: output, shape index: {0}]
  %s8 = inlined_call_operand.hbm [shape: f32[64,512], index: 8, kind: output, shape index: {1}]
  %s9 = inlined_call_operand.hbm [shape: bf16[64,512], index: 9, kind: output, shape index: {2}]
  %s10 = inlined_call_operand.hbm [shape: bf16[64,512], index: 10, kind: output, shape index: {3}]
  %11 = xla_tuple %s7, %s8, %s9, %s10
  %s12 = sld [smem:[#allocation0]]
  $region105: #{tpu_custom_call.1} parent=0
    _
  %s14 = ssub.s32 1, %s12
  %s15 = scalar_select 0, %s14, %s12
  $region1: #{tpu_custom_call.1} parent=0
    #allocation2 [shape = 'u8[65536]{0}', space=vmem, size = 0x10000, scoped, tag = 'input window, operand 0']
    #allocation3 [shape = 's32[2]{0}', space=sflag, size = 0x8, scoped, tag = 'scoped memory for tpu_custom_call.1']
    #allocation4 [shape = 's32[2]{0}', space=sflag, size = 0x8, scoped, tag = 'scoped memory for tpu_custom_call.1']
    #allocation5 [shape = 'u8[65536]{0}', space=vmem, size = 0x10000, scoped, tag = 'input window, operand 1']
    #allocation6 [shape = 's32[2]{0}', space=sflag, size = 0x8, scoped, tag = 'scoped memory for tpu_custom_call.1']
    #allocation7 [shape = 'u8[65536]{0}', space=vmem, size = 0x10000, scoped, tag = 'input window, operand 2']
    #allocation8 [shape = 'u8[2048]{0}', space=vmem, size = 0x800, scoped, tag = 'input window, operand 4']
    #allocation9 [shape = 's32[2]{0}', space=sflag, size = 0x8, scoped, tag = 'scoped memory for tpu_custom_call.1']
    #allocation10 [shape = 'u8[2048]{0}', space=vmem, size = 0x800, scoped, tag = 'input window, operand 6']
    #allocation11 [shape = 'u8[65536]{0}', space=vmem, size = 0x10000, scoped, tag = 'output window, operand 0']
    #allocation12 [shape = 'u8[65536]{0}', space=vmem, size = 0x10000, scoped, tag = 'output window, operand 1']
    #allocation13 [shape = 's32[2]{0}', space=sflag, size = 0x8, scoped, tag = 'scoped memory for tpu_custom_call.1']
    #allocation14 [shape = 'u8[32768]{0}', space=vmem, size = 0x8000, scoped, tag = 'output window, operand 2']
    #allocation15 [shape = 'u8[32768]{0}', space=vmem, size = 0x8000, scoped, tag = 'output window, operand 3']
    #allocation16 [shape = 's32[2]{0}', space=sflag, size = 0x8, scoped, tag = 'scoped memory for tpu_custom_call.1']
    %16 = vsyncpa [#allocation3], 0
    %s17 = scalar_lea.sflag [#allocation3], 1
    %18 = vsyncpa %s17, 0
    %19 = vsyncpa [#allocation6], 0
    %s20 = scalar_lea.sflag [#allocation6], 1
    %21 = vsyncpa %s20, 0
    %22 = vsyncpa [#allocation9], 0
    %s23 = scalar_lea.sflag [#allocation9], 1
    %24 = vsyncpa %s23, 0
    %25 = vsyncpa [#allocation4], 0
    %s26 = scalar_lea.sflag [#allocation4], 1
    %27 = vsyncpa %s26, 0
    %28 = vsyncpa [#allocation13], 0
    %s29 = scalar_lea.sflag [#allocation13], 1
    %30 = vsyncpa %s29, 0
    %31 = vsyncpa [#allocation16], 0
    %s32 = scalar_lea.sflag [#allocation16], 1
    %33 = vsyncpa %s32, 0
    loop: start=0, step=1, limit=6
    $region2: #{tpu_custom_call.1} parent=1 // loop_pre_header
      _
    $region3: #{tpu_custom_call.1} parent=1 // loop_header
      %s35 = sphi 0, %s39
      %p36 = scmp.ge.s32.totalorder %s35, 6
      %s42 = sphi 0, %s54
      %s43 = sphi 0, %s50
      %s44 = sphi 0, %s42
      %s45 = sphi 0, %s43
      %s46 = sphi 0, %s44
      %s47 = sphi 0, %s45
      %s59 = sphi 0, %s61
      %s62 = sphi 0, %s59
      %s63 = sphi 0, %s62
      %s79 = sphi 0, %s63
      %s87 = sphi 0, %s89
      %s90 = sphi 0, %s87
      %s91 = sphi 0, %s90
      %s107 = sphi 0, %s91
      %s115 = sphi 0, %s117
      %s118 = sphi 0, %s115
      %s119 = sphi 0, %s118
      %s135 = sphi 0, %s119
      %s141 = sphi 0, %s143
      %s144 = sphi 0, %s141
      %s145 = sphi 0, %s144
      %s161 = sphi 0, %s145
      %s167 = sphi 0, %s169
      %s170 = sphi 0, %s167
      %s171 = sphi 0, %s170
      %s187 = sphi 0, %s171
      %s193 = sphi 0, %s195
      %s196 = sphi 0, %s193
      %s197 = sphi 0, %s196
      %s213 = sphi 0, %s197
      %s219 = sphi 0, %s221
      %s222 = sphi 0, %s219
      %s223 = sphi 0, %s222
      %s239 = sphi 0, %s223
      %s247 = sphi 0, %s249
      %s250 = sphi 0, %s247
      %s251 = sphi 0, %s250
      %s267 = sphi 0, %s251
      %s275 = sphi 0, %s277
      %s278 = sphi 0, %s275
      %s279 = sphi 0, %s278
      %s295 = sphi 0, %s279
      %s303 = sphi 0, %s305
      %s306 = sphi 0, %s303
      %s307 = sphi 0, %s306
      %s323 = sphi 0, %s307
      %s331 = sphi 0, %s333
      %s334 = sphi 0, %s331
      %s335 = sphi 0, %s334
      %s351 = sphi 0, %s335
    $region4: #{tpu_custom_call.1} parent=1 // loop_header_branch
      %38 = sbr.rel (%p36) target = $region8
    $region5: #{tpu_custom_call.1} parent=1 // loop_body
      %s40 = ssub.s32 %s35, 1
      %s41 = ssub.s32 %s35, 2
      %s48 = sadd.s32 1, %s43
      %p49 = scmp.ge.s32.totalorder %s48, 2
      %s50 = scalar_select %p49, 0, %s48
      %s51 = sadd.s32 1, %s42
      %s52 = scalar_select %p49, %s51, %s42
      %p53 = scmp.ge.s32.totalorder %s52, 2
      %s54 = scalar_select %p53, 0, %s52
      %s55 = ssub.s32 %s43, %s50
      %s56 = ssub.s32 %s42, %s54
      %s57 = sor.u32 %s55, %s56
      %p58 = scmp.eq.s32.totalorder %s57, 0
      %s60 = sadd.s32 %s59, 1
      %s61 = scalar_select %p58, %s59, %s60
      %p64 = pneg %p58
      %p65 = scmp.eq.s32.totalorder %s35, 3
      %p66 = por %p64, %p65
      %p67 = scmp.ne.s32.totalorder %s59, %s62
      %p68 = scmp.eq.s32.totalorder %s35, 0
      %p69 = por %p67, %p68
      %p70 = scmp.ne.s32.totalorder %s59, %s62
      %p71 = scmp.eq.s32.totalorder %s40, 3
      %p72 = por %p70, %p71
      %p73 = scmp.ne.s32.totalorder %s62, %s63
      %p74 = scmp.eq.s32.totalorder %s40, 0
      %p75 = por %p73, %p74
      %p76 = scmp.ne.s32.totalorder %s62, %s63
      %p77 = scmp.eq.s32.totalorder %s41, 3
      %p78 = por %p76, %p77
      %p80 = scmp.ne.s32.totalorder %s63, %s79
      %p81 = scmp.eq.s32.totalorder %s41, 0
      %p82 = por %p80, %p81
      %s83 = ssub.s32 %s43, %s50
      %s84 = ssub.s32 %s42, %s54
      %s85 = sor.u32 %s83, %s84
      %p86 = scmp.eq.s32.totalorder %s85, 0
      %s88 = sadd.s32 %s87, 1
      %s89 = scalar_select %p86, %s87, %s88
      %p92 = pneg %p86
      %p93 = scmp.eq.s32.totalorder %s35, 3
      %p94 = por %p92, %p93
      %p95 = scmp.ne.s32.totalorder %s87, %s90
      %p96 = scmp.eq.s32.totalorder %s35, 0
      %p97 = por %p95, %p96
      %p98 = scmp.ne.s32.totalorder %s87, %s90
      %p99 = scmp.eq.s32.totalorder %s40, 3
      %p100 = por %p98, %p99
      %p101 = scmp.ne.s32.totalorder %s90, %s91
      %p102 = scmp.eq.s32.totalorder %s40, 0
      %p103 = por %p101, %p102
      %p104 = scmp.ne.s32.totalorder %s90, %s91
      %p105 = scmp.eq.s32.totalorder %s41, 3
      %p106 = por %p104, %p105
      %p108 = scmp.ne.s32.totalorder %s91, %s107
      %p109 = scmp.eq.s32.totalorder %s41, 0
      %p110 = por %p108, %p109
      %s111 = ssub.s32 %s43, %s50
      %s112 = ssub.s32 %s42, %s54
      %s113 = sor.u32 %s111, %s112
      %p114 = scmp.eq.s32.totalorder %s113, 0
      %s116 = sadd.s32 %s115, 1
      %s117 = scalar_select %p114, %s115, %s116
      %p120 = pneg %p114
      %p121 = scmp.eq.s32.totalorder %s35, 3
      %p122 = por %p120, %p121
      %p123 = scmp.ne.s32.totalorder %s115, %s118
      %p124 = scmp.eq.s32.totalorder %s35, 0
      %p125 = por %p123, %p124
      %p126 = scmp.ne.s32.totalorder %s115, %s118
      %p127 = scmp.eq.s32.totalorder %s40, 3
      %p128 = por %p126, %p127
      %p129 = scmp.ne.s32.totalorder %s118, %s119
      %p130 = scmp.eq.s32.totalorder %s40, 0
      %p131 = por %p129, %p130
      %p132 = scmp.ne.s32.totalorder %s118, %s119
      %p133 = scmp.eq.s32.totalorder %s41, 3
      %p134 = por %p132, %p133
      %p136 = scmp.ne.s32.totalorder %s119, %s135
      %p137 = scmp.eq.s32.totalorder %s41, 0
      %p138 = por %p136, %p137
      %s139 = ssub.s32 %s42, %s54
      %p140 = scmp.eq.s32.totalorder %s139, 0
      %s142 = sadd.s32 %s141, 1
      %s143 = scalar_select %p140, %s141, %s142
      %p146 = pneg %p140
      %p147 = scmp.eq.s32.totalorder %s35, 3
      %p148 = por %p146, %p147
      %p149 = scmp.ne.s32.totalorder %s141, %s144
      %p150 = scmp.eq.s32.totalorder %s35, 0
      %p151 = por %p149, %p150
      %p152 = scmp.ne.s32.totalorder %s141, %s144
      %p153 = scmp.eq.s32.totalorder %s40, 3
      %p154 = por %p152, %p153
      %p155 = scmp.ne.s32.totalorder %s144, %s145
      %p156 = scmp.eq.s32.totalorder %s40, 0
      %p157 = por %p155, %p156
      %p158 = scmp.ne.s32.totalorder %s144, %s145
      %p159 = scmp.eq.s32.totalorder %s41, 3
      %p160 = por %p158, %p159
      %p162 = scmp.ne.s32.totalorder %s145, %s161
      %p163 = scmp.eq.s32.totalorder %s41, 0
      %p164 = por %p162, %p163
      %s165 = ssub.s32 %s42, %s54
      %p166 = scmp.eq.s32.totalorder %s165, 0
      %s168 = sadd.s32 %s167, 1
      %s169 = scalar_select %p166, %s167, %s168
      %p172 = pneg %p166
      %p173 = scmp.eq.s32.totalorder %s35, 3
      %p174 = por %p172, %p173
      %p175 = scmp.ne.s32.totalorder %s167, %s170
      %p176 = scmp.eq.s32.totalorder %s35, 0
      %p177 = por %p175, %p176
      %p178 = scmp.ne.s32.totalorder %s167, %s170
      %p179 = scmp.eq.s32.totalorder %s40, 3
      %p180 = por %p178, %p179
      %p181 = scmp.ne.s32.totalorder %s170, %s171
      %p182 = scmp.eq.s32.totalorder %s40, 0
      %p183 = por %p181, %p182
      %p184 = scmp.ne.s32.totalorder %s170, %s171
      %p185 = scmp.eq.s32.totalorder %s41, 3
      %p186 = por %p184, %p185
      %p188 = scmp.ne.s32.totalorder %s171, %s187
      %p189 = scmp.eq.s32.totalorder %s41, 0
      %p190 = por %p188, %p189
      %s191 = ssub.s32 %s42, %s54
      %p192 = scmp.eq.s32.totalorder %s191, 0
      %s194 = sadd.s32 %s193, 1
      %s195 = scalar_select %p192, %s193, %s194
      %p198 = pneg %p192
      %p199 = scmp.eq.s32.totalorder %s35, 3
      %p200 = por %p198, %p199
      %p201 = scmp.ne.s32.totalorder %s193, %s196
      %p202 = scmp.eq.s32.totalorder %s35, 0
      %p203 = por %p201, %p202
      %p204 = scmp.ne.s32.totalorder %s193, %s196
      %p205 = scmp.eq.s32.totalorder %s40, 3
      %p206 = por %p204, %p205
      %p207 = scmp.ne.s32.totalorder %s196, %s197
      %p208 = scmp.eq.s32.totalorder %s40, 0
      %p209 = por %p207, %p208
      %p210 = scmp.ne.s32.totalorder %s196, %s197
      %p211 = scmp.eq.s32.totalorder %s41, 3
      %p212 = por %p210, %p211
      %p214 = scmp.ne.s32.totalorder %s197, %s213
      %p215 = scmp.eq.s32.totalorder %s41, 0
      %p216 = por %p214, %p215
      %s217 = ssub.s32 %s42, %s54
      %p218 = scmp.eq.s32.totalorder %s217, 0
      %s220 = sadd.s32 %s219, 1
      %s221 = scalar_select %p218, %s219, %s220
      %p224 = pneg %p218
      %p225 = scmp.eq.s32.totalorder %s35, 3
      %p226 = por %p224, %p225
      %p227 = scmp.ne.s32.totalorder %s219, %s222
      %p228 = scmp.eq.s32.totalorder %s35, 0
      %p229 = por %p227, %p228
      %p230 = scmp.ne.s32.totalorder %s219, %s222
      %p231 = scmp.eq.s32.totalorder %s40, 3
      %p232 = por %p230, %p231
      %p233 = scmp.ne.s32.totalorder %s222, %s223
      %p234 = scmp.eq.s32.totalorder %s40, 0
      %p235 = por %p233, %p234
      %p236 = scmp.ne.s32.totalorder %s222, %s223
      %p237 = scmp.eq.s32.totalorder %s41, 3
      %p238 = por %p236, %p237
      %p240 = scmp.ne.s32.totalorder %s223, %s239
      %p241 = scmp.eq.s32.totalorder %s41, 0
      %p242 = por %p240, %p241
      %s243 = ssub.s32 %s43, %s50
      %s244 = ssub.s32 %s42, %s54
      %s245 = sor.u32 %s243, %s244
      %p246 = scmp.eq.s32.totalorder %s245, 0
      %s248 = sadd.s32 %s247, 1
      %s249 = scalar_select %p246, %s247, %s248
      %p252 = pneg %p246
      %p253 = scmp.eq.s32.totalorder %s35, 3
      %p254 = por %p252, %p253
      %p255 = scmp.ne.s32.totalorder %s247, %s250
      %p256 = scmp.eq.s32.totalorder %s35, 0
      %p257 = por %p255, %p256
      %p258 = scmp.ne.s32.totalorder %s247, %s250
      %p259 = scmp.eq.s32.totalorder %s40, 3
      %p260 = por %p258, %p259
      %p261 = scmp.ne.s32.totalorder %s250, %s251
      %p262 = scmp.eq.s32.totalorder %s40, 0
      %p263 = por %p261, %p262
      %p264 = scmp.ne.s32.totalorder %s250, %s251
      %p265 = scmp.eq.s32.totalorder %s41, 3
      %p266 = por %p264, %p265
      %p268 = scmp.ne.s32.totalorder %s251, %s267
      %p269 = scmp.eq.s32.totalorder %s41, 0
      %p270 = por %p268, %p269
      %s271 = ssub.s32 %s43, %s50
      %s272 = ssub.s32 %s42, %s54
      %s273 = sor.u32 %s271, %s272
      %p274 = scmp.eq.s32.totalorder %s273, 0
      %s276 = sadd.s32 %s275, 1
      %s277 = scalar_select %p274, %s275, %s276
      %p280 = pneg %p274
      %p281 = scmp.eq.s32.totalorder %s35, 3
      %p282 = por %p280, %p281
      %p283 = scmp.ne.s32.totalorder %s275, %s278
      %p284 = scmp.eq.s32.totalorder %s35, 0
      %p285 = por %p283, %p284
      %p286 = scmp.ne.s32.totalorder %s275, %s278
      %p287 = scmp.eq.s32.totalorder %s40, 3
      %p288 = por %p286, %p287
      %p289 = scmp.ne.s32.totalorder %s278, %s279
      %p290 = scmp.eq.s32.totalorder %s40, 0
      %p291 = por %p289, %p290
      %p292 = scmp.ne.s32.totalorder %s278, %s279
      %p293 = scmp.eq.s32.totalorder %s41, 3
      %p294 = por %p292, %p293
      %p296 = scmp.ne.s32.totalorder %s279, %s295
      %p297 = scmp.eq.s32.totalorder %s41, 0
      %p298 = por %p296, %p297
      %s299 = ssub.s32 %s43, %s50
      %s300 = ssub.s32 %s42, %s54
      %s301 = sor.u32 %s299, %s300
      %p302 = scmp.eq.s32.totalorder %s301, 0
      %s304 = sadd.s32 %s303, 1
      %s305 = scalar_select %p302, %s303, %s304
      %p308 = pneg %p302
      %p309 = scmp.eq.s32.totalorder %s35, 3
      %p310 = por %p308, %p309
      %p311 = scmp.ne.s32.totalorder %s303, %s306
      %p312 = scmp.eq.s32.totalorder %s35, 0
      %p313 = por %p311, %p312
      %p314 = scmp.ne.s32.totalorder %s303, %s306
      %p315 = scmp.eq.s32.totalorder %s40, 3
      %p316 = por %p314, %p315
      %p317 = scmp.ne.s32.totalorder %s306, %s307
      %p318 = scmp.eq.s32.totalorder %s40, 0
      %p319 = por %p317, %p318
      %p320 = scmp.ne.s32.totalorder %s306, %s307
      %p321 = scmp.eq.s32.totalorder %s41, 3
      %p322 = por %p320, %p321
      %p324 = scmp.ne.s32.totalorder %s307, %s323
      %p325 = scmp.eq.s32.totalorder %s41, 0
      %p326 = por %p324, %p325
      %s327 = ssub.s32 %s43, %s50
      %s328 = ssub.s32 %s42, %s54
      %s329 = sor.u32 %s327, %s328
      %p330 = scmp.eq.s32.totalorder %s329, 0
      %s332 = sadd.s32 %s331, 1
      %s333 = scalar_select %p330, %s331, %s332
      %p336 = pneg %p330
      %p337 = scmp.eq.s32.totalorder %s35, 3
      %p338 = por %p336, %p337
      %p339 = scmp.ne.s32.totalorder %s331, %s334
      %p340 = scmp.eq.s32.totalorder %s35, 0
      %p341 = por %p339, %p340
      %p342 = scmp.ne.s32.totalorder %s331, %s334
      %p343 = scmp.eq.s32.totalorder %s40, 3
      %p344 = por %p342, %p343
      %p345 = scmp.ne.s32.totalorder %s334, %s335
      %p346 = scmp.eq.s32.totalorder %s40, 0
      %p347 = por %p345, %p346
      %p348 = scmp.ne.s32.totalorder %s334, %s335
      %p349 = scmp.eq.s32.totalorder %s41, 3
      %p350 = por %p348, %p349
      %p352 = scmp.ne.s32.totalorder %s335, %s351
      %p353 = scmp.eq.s32.totalorder %s41, 0
      %p354 = por %p352, %p353
      %p355 = scmp.le.s32.totalorder 1, %s35
      %p356 = scmp.lt.s32.totalorder %s35, 5
      %p357 = pnand %p355, %p356
      %p358 = pneg %p357
      // Predicated region
      $region9: #{tpu_custom_call.1} parent=5 // pred_check
        _
      $region10: #{tpu_custom_call.1} parent=5 // pred_check_branch
        %360 = sbr.rel (%p357) target = $region12
      $region11: #{tpu_custom_call.1} parent=5 // pred_region
        %s361 = ssub.s32 %s35, 1
      $region12: #{tpu_custom_call.1} parent=5 // pred_fallthru
        _
      %p362 = scmp.lt.s32.totalorder %s35, 4
      // Predicated region
      $region13: #{tpu_custom_call.1} parent=5 // pred_check
        %p363 = pneg %p362
      $region14: #{tpu_custom_call.1} parent=5 // pred_check_branch
        %365 = sbr.rel (%p363) target = $region16
      $region15: #{tpu_custom_call.1} parent=5 // pred_region
        // Predicated region
        $region17: #{tpu_custom_call.1} parent=15 // pred_check
          %p366 = pneg %p69
        $region18: #{tpu_custom_call.1} parent=15 // pred_check_branch
          %368 = sbr.rel (%p366) target = $region20
        $region19: #{tpu_custom_call.1} parent=15 // pred_region
          %s369 = sand.u32 %s59, 1
          %s370 = scalar_lea.sflag [#allocation3], %s369
          %s371 = sand.u32 %s59, 1
          %s372 = smul.addr %s371, 64
          %s373 = scalar_lea.vmem [#allocation2], %s372
          %s374 = smul.u32 4, %s43
          %s375 = smul.u32 2, %s42
          %s377 = ssub.s32 1024, 1024
          %378 = vsyncadd %s370, %s377
          %s379 = smul.addr %s374, 4
          %s380 = sadd.s32 %s375, %s379
          %s381 = smul.addr %s380, 128
          %s382 = scalar_lea.hbm %s0, %s381
          %s383 = sshll.u32 %s373, 4
          %s384 = int_to_ptr.vmem [resolvable:$true] %s383
          %389 = dma.hbm_to_vmem [thread:$0]  %s382, 1024, %s384, %s370, 512, 256, 16
        $region20: #{tpu_custom_call.1} parent=15 // pred_fallthru
          _
        // Predicated region
        $region21: #{tpu_custom_call.1} parent=15 // pred_check
          %p390 = pneg %p97
        $region22: #{tpu_custom_call.1} parent=15 // pred_check_branch
          %392 = sbr.rel (%p390) target = $region24
        $region23: #{tpu_custom_call.1} parent=15 // pred_region
          %s393 = sand.u32 %s35, 1
          %s394 = scalar_lea.sflag [#allocation6], %s393
          %s395 = sand.u32 %s87, 1
          %s396 = smul.addr %s395, 64
          %s397 = scalar_lea.vmem [#allocation5], %s396
          %s398 = smul.u32 4, %s43
          %s399 = smul.u32 2, %s42
          %s401 = ssub.s32 1024, 1024
          %402 = vsyncadd %s394, %s401
          %s403 = smul.addr %s398, 4
          %s404 = sadd.s32 %s399, %s403
          %s405 = smul.addr %s404, 128
          %s406 = scalar_lea.hbm %s1, %s405
          %s407 = sshll.u32 %s397, 4
          %s408 = int_to_ptr.vmem [resolvable:$true] %s407
          %413 = dma.hbm_to_vmem [thread:$0]  %s406, 1024, %s408, %s394, 512, 256, 16
        $region24: #{tpu_custom_call.1} parent=15 // pred_fallthru
          _
        // Predicated region
        $region25: #{tpu_custom_call.1} parent=15 // pred_check
          %p414 = pneg %p125
        $region26: #{tpu_custom_call.1} parent=15 // pred_check_branch
          %416 = sbr.rel (%p414) target = $region28
        $region27: #{tpu_custom_call.1} parent=15 // pred_region
          %s417 = sand.u32 %s35, 1
          %s418 = scalar_lea.sflag [#allocation6], %s417
          %s419 = sand.u32 %s115, 1
          %s420 = smul.addr %s419, 64
          %s421 = scalar_lea.vmem [#allocation7], %s420
          %s422 = smul.u32 4, %s43
          %s423 = smul.u32 2, %s42
          %s425 = ssub.s32 1024, 1024
          %426 = vsyncadd %s418, %s425
          %s427 = smul.addr %s422, 4
          %s428 = sadd.s32 %s423, %s427
          %s429 = smul.addr %s428, 128
          %s430 = scalar_lea.hbm %s2, %s429
          %s431 = sshll.u32 %s421, 4
          %s432 = int_to_ptr.vmem [resolvable:$true] %s431
          %437 = dma.hbm_to_vmem [thread:$0]  %s430, 1024, %s432, %s418, 512, 256, 16
        $region28: #{tpu_custom_call.1} parent=15 // pred_fallthru
          _
        // Predicated region
        $region29: #{tpu_custom_call.1} parent=15 // pred_check
          %p438 = pneg %p151
        $region30: #{tpu_custom_call.1} parent=15 // pred_check_branch
          %440 = sbr.rel (%p438) target = $region32
        $region31: #{tpu_custom_call.1} parent=15 // pred_region
          %s441 = smul.u32 2, %s42
          %p442 = scmp.lt.s32.totalorder %s441, 3
          %s443 = scalar_select %p442, %s441, 3
          %s444 = scalar_lea.vmem %s3, %s443
          %s445 = smul.u32 2, %s42
        $region32: #{tpu_custom_call.1} parent=15 // pred_fallthru
          _
        // Predicated region
        $region33: #{tpu_custom_call.1} parent=15 // pred_check
          %p446 = pneg %p177
        $region34: #{tpu_custom_call.1} parent=15 // pred_check_branch
          %448 = sbr.rel (%p446) target = $region36
        $region35: #{tpu_custom_call.1} parent=15 // pred_region
          %s449 = sand.u32 %s35, 1
          %s450 = scalar_lea.sflag [#allocation9], %s449
          %s451 = sand.u32 %s167, 1
          %s452 = smul.addr %s451, 2
          %s453 = scalar_lea.vmem [#allocation8], %s452
          %s454 = smul.u32 2, %s42
          %s456 = ssub.s32 32, 32
          %457 = vsyncadd %s450, %s456
          %s458 = smul.addr %s454, 16
          %s459 = scalar_lea.hbm %s4, %s458
          %s461 = sshll.u32 %s453, 4
          %s462 = int_to_ptr.vmem [resolvable:$true] %s461
          %464 = dma.hbm_to_vmem [thread:$0]  %s459, 32, %s462, %s450
        $region36: #{tpu_custom_call.1} parent=15 // pred_fallthru
          _
        // Predicated region
        $region37: #{tpu_custom_call.1} parent=15 // pred_check
          %p465 = pneg %p203
        $region38: #{tpu_custom_call.1} parent=15 // pred_check_branch
          %467 = sbr.rel (%p465) target = $region40
        $region39: #{tpu_custom_call.1} parent=15 // pred_region
          %s468 = smul.u32 2, %s42
          %p469 = scmp.lt.s32.totalorder %s468, 3
          %s470 = scalar_select %p469, %s468, 3
          %s471 = scalar_lea.vmem %s5, %s470
          %s472 = smul.u32 2, %s42
        $region40: #{tpu_custom_call.1} parent=15 // pred_fallthru
          _
        // Predicated region
        $region41: #{tpu_custom_call.1} parent=15 // pred_check
          %p473 = pneg %p229
        $region42: #{tpu_custom_call.1} parent=15 // pred_check_branch
          %475 = sbr.rel (%p473) target = $region44
        $region43: #{tpu_custom_call.1} parent=15 // pred_region
          %s476 = sand.u32 %s35, 1
          %s477 = scalar_lea.sflag [#allocation9], %s476
          %s478 = sand.u32 %s219, 1
          %s479 = smul.addr %s478, 2
          %s480 = scalar_lea.vmem [#allocation10], %s479
          %s481 = smul.u32 2, %s42
          %s483 = ssub.s32 32, 32
          %484 = vsyncadd %s477, %s483
          %s485 = smul.addr %s481, 16
          %s486 = scalar_lea.hbm %s6, %s485
          %s488 = sshll.u32 %s480, 4
          %s489 = int_to_ptr.vmem [resolvable:$true] %s488
          %491 = dma.hbm_to_vmem [thread:$0]  %s486, 32, %s489, %s477
        $region44: #{tpu_custom_call.1} parent=15 // pred_fallthru
          _
      $region16: #{tpu_custom_call.1} parent=5 // pred_fallthru
        _
      %p492 = scmp.le.s32.totalorder 1, %s35
      %p493 = scmp.lt.s32.totalorder %s35, 5
      %p494 = pnand %p492, %p493
      %p495 = pneg %p494
      // Predicated region
      $region45: #{tpu_custom_call.1} parent=5 // pred_check
        _
      $region46: #{tpu_custom_call.1} parent=5 // pred_check_branch
        %497 = sbr.rel (%p494) target = $region48
      $region47: #{tpu_custom_call.1} parent=5 // pred_region
        %s498 = ssub.s32 %s35, 1
        %s499 = sand.u32 %s62, 1
        %s500 = scalar_lea.sflag [#allocation3], %s499
        %s501 = sand.u32 %s62, 1
        %s502 = smul.addr %s501, 64
        %s503 = scalar_lea.vmem [#allocation2], %s502
        // Predicated region
        $region49: #{tpu_custom_call.1} parent=47 // pred_check
          %p504 = pneg %p75
        $region50: #{tpu_custom_call.1} parent=47 // pred_check_branch
          %506 = sbr.rel (%p504) target = $region52
        $region51: #{tpu_custom_call.1} parent=47 // pred_region
          %507 = dma.done %s500, 1024
        $region52: #{tpu_custom_call.1} parent=47 // pred_fallthru
          _
        %s508 = sand.u32 %s40, 1
        %s509 = scalar_lea.sflag [#allocation6], %s508
        %s510 = sand.u32 %s90, 1
        %s511 = smul.addr %s510, 64
        %s512 = scalar_lea.vmem [#allocation5], %s511
        // Predicated region
        $region53: #{tpu_custom_call.1} parent=47 // pred_check
          %p513 = pneg %p103
        $region54: #{tpu_custom_call.1} parent=47 // pred_check_branch
          %515 = sbr.rel (%p513) target = $region56
        $region55: #{tpu_custom_call.1} parent=47 // pred_region
          %516 = dma.done %s509, 1024
        $region56: #{tpu_custom_call.1} parent=47 // pred_fallthru
          _
        %s517 = sand.u32 %s40, 1
        %s518 = scalar_lea.sflag [#allocation6], %s517
        %s519 = sand.u32 %s118, 1
        %s520 = smul.addr %s519, 64
        %s521 = scalar_lea.vmem [#allocation7], %s520
        // Predicated region
        $region57: #{tpu_custom_call.1} parent=47 // pred_check
          %p522 = pneg %p131
        $region58: #{tpu_custom_call.1} parent=47 // pred_check_branch
          %524 = sbr.rel (%p522) target = $region60
        $region59: #{tpu_custom_call.1} parent=47 // pred_region
          %525 = dma.done %s518, 1024
        $region60: #{tpu_custom_call.1} parent=47 // pred_fallthru
          _
        %s526 = sand.u32 %s40, 1
        %s527 = scalar_lea.sflag [#allocation9], %s526
        %s528 = sand.u32 %s170, 1
        %s529 = smul.addr %s528, 2
        %s530 = scalar_lea.vmem [#allocation8], %s529
        // Predicated region
        $region61: #{tpu_custom_call.1} parent=47 // pred_check
          %p531 = pneg %p183
        $region62: #{tpu_custom_call.1} parent=47 // pred_check_branch
          %533 = sbr.rel (%p531) target = $region64
        $region63: #{tpu_custom_call.1} parent=47 // pred_region
          %534 = dma.done %s527, 32
        $region64: #{tpu_custom_call.1} parent=47 // pred_fallthru
          _
        %s535 = sand.u32 %s40, 1
        %s536 = scalar_lea.sflag [#allocation9], %s535
        %s537 = sand.u32 %s222, 1
        %s538 = smul.addr %s537, 2
        %s539 = scalar_lea.vmem [#allocation10], %s538
        // Predicated region
        $region65: #{tpu_custom_call.1} parent=47 // pred_check
          %p540 = pneg %p235
        $region66: #{tpu_custom_call.1} parent=47 // pred_check_branch
          %542 = sbr.rel (%p540) target = $region68
        $region67: #{tpu_custom_call.1} parent=47 // pred_region
          %543 = dma.done %s536, 32
        $region68: #{tpu_custom_call.1} parent=47 // pred_fallthru
          _
        %s544 = sand.u32 %s62, 1
        %s545 = scalar_lea.sflag [#allocation3], %s544
        %s546 = sand.u32 %s62, 1
        %s547 = smul.addr %s546, 64
        %s548 = scalar_lea.vmem [#allocation2], %s547
        %p549 = pneg %p75
        %p550 = pneg %p72
        %s551 = sand.u32 %s40, 1
        %s552 = scalar_lea.sflag [#allocation6], %s551
        %s553 = sand.u32 %s90, 1
        %s554 = smul.addr %s553, 64
        %s555 = scalar_lea.vmem [#allocation5], %s554
        %p556 = pneg %p103
        %p557 = pneg %p100
        %s558 = sand.u32 %s40, 1
        %s559 = scalar_lea.sflag [#allocation6], %s558
        %s560 = sand.u32 %s118, 1
        %s561 = smul.addr %s560, 64
        %s562 = scalar_lea.vmem [#allocation7], %s561
        %p563 = pneg %p131
        %p564 = pneg %p128
        %s565 = smul.u32 2, %s44
        %p566 = scmp.lt.s32.totalorder %s565, 3
        %s567 = scalar_select %p566, %s565, 3
        %s568 = scalar_lea.vmem %s3, %s567
        %p569 = pneg %p157
        %p570 = pneg %p154
        %s571 = sand.u32 %s40, 1
        %s572 = scalar_lea.sflag [#allocation9], %s571
        %s573 = sand.u32 %s170, 1
        %s574 = smul.addr %s573, 2
        %s575 = scalar_lea.vmem [#allocation8], %s574
        %p576 = pneg %p183
        %p577 = pneg %p180
        %s578 = smul.u32 2, %s44
        %p579 = scmp.lt.s32.totalorder %s578, 3
        %s580 = scalar_select %p579, %s578, 3
        %s581 = scalar_lea.vmem %s5, %s580
        %p582 = pneg %p209
        %p583 = pneg %p206
        %s584 = sand.u32 %s40, 1
        %s585 = scalar_lea.sflag [#allocation9], %s584
        %s586 = sand.u32 %s222, 1
        %s587 = smul.addr %s586, 2
        %s588 = scalar_lea.vmem [#allocation10], %s587
        %p589 = pneg %p235
        %p590 = pneg %p232
        %p591 = pneg %p263
        %p592 = pneg %p260
        %s593 = sand.u32 %s250, 1
        %s594 = scalar_lea.sflag [#allocation4], %s593
        %s595 = sand.u32 %s250, 1
        %s596 = smul.addr %s595, 64
        %s597 = scalar_lea.vmem [#allocation11], %s596
        %p598 = pneg %p291
        %p599 = pneg %p288
        %s600 = sand.u32 %s40, 1
        %s601 = scalar_lea.sflag [#allocation13], %s600
        %s602 = sand.u32 %s278, 1
        %s603 = smul.addr %s602, 64
        %s604 = scalar_lea.vmem [#allocation12], %s603
        %p605 = pneg %p319
        %p606 = pneg %p316
        %s607 = sand.u32 %s40, 1
        %s608 = scalar_lea.sflag [#allocation13], %s607
        %s609 = sand.u32 %s306, 1
        %s610 = smul.addr %s609, 32
        %s611 = scalar_lea.vmem [#allocation14], %s610
        %p612 = pneg %p347
        %p613 = pneg %p344
        %s614 = sand.u32 %s334, 1
        %s615 = scalar_lea.sflag [#allocation16], %s614
        %s616 = sand.u32 %s334, 1
        %s617 = smul.addr %s616, 32
        %s618 = scalar_lea.vmem [#allocation15], %s617
        %s619 = smul.u32 4, %s45
        %s620 = smul.u32 2, %s44
        %s621 = smul.u32 4, %s45
        %s622 = smul.u32 2, %s44
        %s623 = smul.u32 4, %s45
        %s624 = smul.u32 2, %s44
        %s625 = smul.u32 2, %s44
        %p626 = scmp.lt.s32.totalorder %s625, 3
        %s627 = scalar_select %p626, %s625, 3
        %s628 = scalar_lea.vmem %s3, %s627
        %s629 = smul.u32 2, %s44
        %s630 = smul.u32 2, %s44
        %s631 = smul.u32 2, %s44
        %p632 = scmp.lt.s32.totalorder %s631, 3
        %s633 = scalar_select %p632, %s631, 3
        %s634 = scalar_lea.vmem %s5, %s633
        %s635 = smul.u32 2, %s44
        %s636 = smul.u32 2, %s44
        %s637 = smul.u32 4, %s45
        %s638 = smul.u32 2, %s44
        %s639 = smul.u32 4, %s45
        %s640 = smul.u32 2, %s44
        %s641 = smul.u32 4, %s45
        %s642 = smul.u32 2, %s44
        %s643 = smul.u32 4, %s45
        %s644 = smul.u32 2, %s44
        %v645 = vld [vmem:[%s628] sm:$0x3]
        %v646 = vld [vmem:[%s503] sm:$0xff]
        %v647 = vld [vmem:[%s503 + $0x8] sm:$0xff]
        %v648 = vld [vmem:[%s503 + $0x10] sm:$0xff]
        %v649 = vld [vmem:[%s503 + $0x18] sm:$0xff]
        %v650 = vld [vmem:[%s503 + $0x20] sm:$0xff]
        %v651 = vld [vmem:[%s503 + $0x28] sm:$0xff]
        %v652 = vld [vmem:[%s503 + $0x30] sm:$0xff]
        %v653 = vld [vmem:[%s503 + $0x38] sm:$0xff]
        %v655 = vlaneseq
        %v656 = vshrl.u32 %v655, 7
        %v657 = vsub.s32 0, %v656
        %v658 = vrot.slane %v645, %v657
        %v659 = vlaneseq
        %v660 = vshrl.u32 %v659, 7
        %v661 = vsub.s32 1, %v660
        %v662 = vrot.slane %v645, %v661
        %v665 = vmul.f32 %v658, %v646
        %v666 = vmul.f32 %v662, %v647
        %v667 = vmul.f32 %v658, %v648
        %v668 = vmul.f32 %v662, %v649
        %v669 = vmul.f32 %v658, %v650
        %v670 = vmul.f32 %v662, %v651
        %v671 = vmul.f32 %v658, %v652
        %v672 = vmul.f32 %v662, %v653
        %v673 = vld [vmem:[%s530] sm:$0x3]
        %v675 = vlaneseq
        %v676 = vshrl.u32 %v675, 7
        %v677 = vsub.s32 0, %v676
        %v678 = vrot.slane %v673, %v677
        %v679 = vlaneseq
        %v680 = vshrl.u32 %v679, 7
        %v681 = vsub.s32 1, %v680
        %v682 = vrot.slane %v673, %v681
        %v685 = vadd.f32 %v665, %v678
        %v686 = vadd.f32 %v666, %v682
        %v687 = vadd.f32 %v667, %v678
        %v688 = vadd.f32 %v668, %v682
        %v689 = vadd.f32 %v669, %v678
        %v690 = vadd.f32 %v670, %v682
        %v691 = vadd.f32 %v671, %v678
        %v692 = vadd.f32 %v672, %v682
        %v693 = vmul.f32 %v685, 1.442695
        %v694 = vpow.pop %v693
        %v695 = vmul.f32 %v686, 1.442695
        %v696 = vpow.pop %v695
        %v697 = vmul.f32 %v687, 1.442695
        %v698 = vpow.pop %v697
        %v699 = vmul.f32 %v688, 1.442695
        %v700 = vpow.pop %v699
        %v701 = vmul.f32 %v689, 1.442695
        %v702 = vpow.pop %v701
        %v703 = vmul.f32 %v690, 1.442695
        %v704 = vpow.pop %v703
        %v705 = vmul.f32 %v691, 1.442695
        %v706 = vpow.pop %v705
        %v707 = vmul.f32 %v692, 1.442695
        %v708 = vpow.pop %v707
        %v709 = vld [vmem:[%s512] sm:$0xff]
        %v710 = vld [vmem:[%s512 + $0x8] sm:$0xff]
        %v711 = vld [vmem:[%s512 + $0x10] sm:$0xff]
        %v712 = vld [vmem:[%s512 + $0x18] sm:$0xff]
        %v713 = vld [vmem:[%s512 + $0x20] sm:$0xff]
        %v714 = vld [vmem:[%s512 + $0x28] sm:$0xff]
        %v715 = vld [vmem:[%s512 + $0x30] sm:$0xff]
        %v716 = vld [vmem:[%s512 + $0x38] sm:$0xff]
        %v717 = vld [vmem:[%s634] sm:$0x3]
        %v719 = vlaneseq
        %v720 = vshrl.u32 %v719, 7
        %v721 = vsub.s32 0, %v720
        %v722 = vrot.slane %v717, %v721
        %v723 = vlaneseq
        %v724 = vshrl.u32 %v723, 7
        %v725 = vsub.s32 1, %v724
        %v726 = vrot.slane %v717, %v725
        %v729 = vadd.f32 %v709, %v722
        %v730 = vadd.f32 %v710, %v726
        %v731 = vadd.f32 %v711, %v722
        %v732 = vadd.f32 %v712, %v726
        %v733 = vadd.f32 %v713, %v722
        %v734 = vadd.f32 %v714, %v726
        %v735 = vadd.f32 %v715, %v722
        %v736 = vadd.f32 %v716, %v726
        %v737 = vmul.f32 %v729, 1.1111112
        %v738 = vmul.f32 %v730, 1.1111112
        %v739 = vmul.f32 %v731, 1.1111112
        %v740 = vmul.f32 %v732, 1.1111112
        %v741 = vmul.f32 %v733, 1.1111112
        %v742 = vmul.f32 %v734, 1.1111112
        %v743 = vmul.f32 %v735, 1.1111112
        %v744 = vmul.f32 %v736, 1.1111112
        %v745 = vxor.u32 %v737, 2147483648
        %v746 = vxor.u32 %v738, 2147483648
        %v747 = vxor.u32 %v739, 2147483648
        %v748 = vxor.u32 %v740, 2147483648
        %v749 = vxor.u32 %v741, 2147483648
        %v750 = vxor.u32 %v742, 2147483648
        %v751 = vxor.u32 %v743, 2147483648
        %v752 = vxor.u32 %v744, 2147483648
        %v753 = vmul.f32 %v745, 1.442695
        %v754 = vpow.pop %v753
        %v755 = vmul.f32 %v746, 1.442695
        %v756 = vpow.pop %v755
        %v757 = vmul.f32 %v747, 1.442695
        %v758 = vpow.pop %v757
        %v759 = vmul.f32 %v748, 1.442695
        %v760 = vpow.pop %v759
        %v761 = vmul.f32 %v749, 1.442695
        %v762 = vpow.pop %v761
        %v763 = vmul.f32 %v750, 1.442695
        %v764 = vpow.pop %v763
        %v765 = vmul.f32 %v751, 1.442695
        %v766 = vpow.pop %v765
        %v767 = vmul.f32 %v752, 1.442695
        %v768 = vpow.pop %v767
        %v769 = vadd.f32 %v754, 1.0
        %v770 = vadd.f32 %v756, 1.0
        %v771 = vadd.f32 %v758, 1.0
        %v772 = vadd.f32 %v760, 1.0
        %v773 = vadd.f32 %v762, 1.0
        %v774 = vadd.f32 %v764, 1.0
        %v775 = vadd.f32 %v766, 1.0
        %v776 = vadd.f32 %v768, 1.0
        %v777 = vrcp.pop %v769
        %v778 = vmul.f32 1.0, %v777
        %v779 = vrcp.pop %v770
        %v780 = vmul.f32 1.0, %v779
        %v781 = vrcp.pop %v771
        %v782 = vmul.f32 1.0, %v781
        %v783 = vrcp.pop %v772
        %v784 = vmul.f32 1.0, %v783
        %v785 = vrcp.pop %v773
        %v786 = vmul.f32 1.0, %v785
        %v787 = vrcp.pop %v774
        %v788 = vmul.f32 1.0, %v787
        %v789 = vrcp.pop %v775
        %v790 = vmul.f32 1.0, %v789
        %v791 = vrcp.pop %v776
        %v792 = vmul.f32 1.0, %v791
        %v793 = vld [vmem:[%s521] sm:$0xff]
        %v794 = vld [vmem:[%s521 + $0x8] sm:$0xff]
        %v795 = vld [vmem:[%s521 + $0x10] sm:$0xff]
        %v796 = vld [vmem:[%s521 + $0x18] sm:$0xff]
        %v797 = vld [vmem:[%s521 + $0x20] sm:$0xff]
        %v798 = vld [vmem:[%s521 + $0x28] sm:$0xff]
        %v799 = vld [vmem:[%s521 + $0x30] sm:$0xff]
        %v800 = vld [vmem:[%s521 + $0x38] sm:$0xff]
        %v801 = vld [vmem:[%s539] sm:$0x3]
        %v803 = vlaneseq
        %v804 = vshrl.u32 %v803, 7
        %v805 = vsub.s32 0, %v804
        %v806 = vrot.slane %v801, %v805
        %v807 = vlaneseq
        %v808 = vshrl.u32 %v807, 7
        %v809 = vsub.s32 1, %v808
        %v810 = vrot.slane %v801, %v809
        %v813 = vadd.f32 %v793, %v806
        %v814 = vadd.f32 %v794, %v810
        %v815 = vadd.f32 %v795, %v806
        %v816 = vadd.f32 %v796, %v810
        %v817 = vadd.f32 %v797, %v806
        %v818 = vadd.f32 %v798, %v810
        %v819 = vadd.f32 %v799, %v806
        %v820 = vadd.f32 %v800, %v810
        %v821 = vmul.f32 %v813, 1.5
        %v822 = vmul.f32 %v814, 1.5
        %v823 = vmul.f32 %v815, 1.5
        %v824 = vmul.f32 %v816, 1.5
        %v825 = vmul.f32 %v817, 1.5
        %v826 = vmul.f32 %v818, 1.5
        %v827 = vmul.f32 %v819, 1.5
        %v828 = vmul.f32 %v820, 1.5
        %v829 = vxor.u32 %v821, 2147483648
        %v830 = vxor.u32 %v822, 2147483648
        %v831 = vxor.u32 %v823, 2147483648
        %v832 = vxor.u32 %v824, 2147483648
        %v833 = vxor.u32 %v825, 2147483648
        %v834 = vxor.u32 %v826, 2147483648
        %v835 = vxor.u32 %v827, 2147483648
        %v836 = vxor.u32 %v828, 2147483648
        %v837 = vmul.f32 %v829, 1.442695
        %v838 = vpow.pop %v837
        %v839 = vmul.f32 %v830, 1.442695
        %v840 = vpow.pop %v839
        %v841 = vmul.f32 %v831, 1.442695
        %v842 = vpow.pop %v841
        %v843 = vmul.f32 %v832, 1.442695
        %v844 = vpow.pop %v843
        %v845 = vmul.f32 %v833, 1.442695
        %v846 = vpow.pop %v845
        %v847 = vmul.f32 %v834, 1.442695
        %v848 = vpow.pop %v847
        %v849 = vmul.f32 %v835, 1.442695
        %v850 = vpow.pop %v849
        %v851 = vmul.f32 %v836, 1.442695
        %v852 = vpow.pop %v851
        %v853 = vadd.f32 %v838, 1.0
        %v854 = vadd.f32 %v840, 1.0
        %v855 = vadd.f32 %v842, 1.0
        %v856 = vadd.f32 %v844, 1.0
        %v857 = vadd.f32 %v846, 1.0
        %v858 = vadd.f32 %v848, 1.0
        %v859 = vadd.f32 %v850, 1.0
        %v860 = vadd.f32 %v852, 1.0
        %v861 = vrcp.pop %v853
        %v862 = vmul.f32 1.0, %v861
        %v863 = vrcp.pop %v854
        %v864 = vmul.f32 1.0, %v863
        %v865 = vrcp.pop %v855
        %v866 = vmul.f32 1.0, %v865
        %v867 = vrcp.pop %v856
        %v868 = vmul.f32 1.0, %v867
        %v869 = vrcp.pop %v857
        %v870 = vmul.f32 1.0, %v869
        %v871 = vrcp.pop %v858
        %v872 = vmul.f32 1.0, %v871
        %v873 = vrcp.pop %v859
        %v874 = vmul.f32 1.0, %v873
        %v875 = vrcp.pop %v860
        %v876 = vmul.f32 1.0, %v875
        %v877 = vmul.f32 %v862, 1.2
        %v878 = vmul.f32 %v864, 1.2
        %v879 = vmul.f32 %v866, 1.2
        %v880 = vmul.f32 %v868, 1.2
        %v881 = vmul.f32 %v870, 1.2
        %v882 = vmul.f32 %v872, 1.2
        %v883 = vmul.f32 %v874, 1.2
        %v884 = vmul.f32 %v876, 1.2
        %v885 = vadd.f32 %v877, -0.1
        %v886 = vadd.f32 %v878, -0.1
        %v887 = vadd.f32 %v879, -0.1
        %v888 = vadd.f32 %v880, -0.1
        %v889 = vadd.f32 %v881, -0.1
        %v890 = vadd.f32 %v882, -0.1
        %v891 = vadd.f32 %v883, -0.1
        %v892 = vadd.f32 %v884, -0.1
        %v893 = vmax.f32 %v885, 0.0
        %v894 = vmax.f32 %v886, 0.0
        %v895 = vmax.f32 %v887, 0.0
        %v896 = vmax.f32 %v888, 0.0
        %v897 = vmax.f32 %v889, 0.0
        %v898 = vmax.f32 %v890, 0.0
        %v899 = vmax.f32 %v891, 0.0
        %v900 = vmax.f32 %v892, 0.0
        %v901 = vmin.f32 %v893, 1.0
        %v902 = vmin.f32 %v894, 1.0
        %v903 = vmin.f32 %v895, 1.0
        %v904 = vmin.f32 %v896, 1.0
        %v905 = vmin.f32 %v897, 1.0
        %v906 = vmin.f32 %v898, 1.0
        %v907 = vmin.f32 %v899, 1.0
        %v908 = vmin.f32 %v900, 1.0
        %v909 = vmul.f32 %v778, 2.0
        %v910 = vmul.f32 %v780, 2.0
        %v911 = vmul.f32 %v782, 2.0
        %v912 = vmul.f32 %v784, 2.0
        %v913 = vmul.f32 %v786, 2.0
        %v914 = vmul.f32 %v788, 2.0
        %v915 = vmul.f32 %v790, 2.0
        %v916 = vmul.f32 %v792, 2.0
        %v917 = vsub.f32 %v909, 1.0
        %v918 = vsub.f32 %v910, 1.0
        %v919 = vsub.f32 %v911, 1.0
        %v920 = vsub.f32 %v912, 1.0
        %v921 = vsub.f32 %v913, 1.0
        %v922 = vsub.f32 %v914, 1.0
        %v923 = vsub.f32 %v915, 1.0
        %v924 = vsub.f32 %v916, 1.0
        %v925 = vmul.f32 %v917, %v694
        %v926 = vmul.f32 %v918, %v696
        %v927 = vmul.f32 %v919, %v698
        %v928 = vmul.f32 %v920, %v700
        %v929 = vmul.f32 %v921, %v702
        %v930 = vmul.f32 %v922, %v704
        %v931 = vmul.f32 %v923, %v706
        %v932 = vmul.f32 %v924, %v708
        %v933 = vmul.f32 %v901, %v925
        %v934 = vmul.f32 %v902, %v926
        %v935 = vmul.f32 %v903, %v927
        %v936 = vmul.f32 %v904, %v928
        %v937 = vmul.f32 %v905, %v929
        %v938 = vmul.f32 %v906, %v930
        %v939 = vmul.f32 %v907, %v931
        %v940 = vmul.f32 %v908, %v932
        %941 = vst [vmem:[%s597] sm:$0xff] %v933
        %942 = vst [vmem:[%s597 + $0x8] sm:$0xff] %v934
        %943 = vst [vmem:[%s597 + $0x10] sm:$0xff] %v935
        %944 = vst [vmem:[%s597 + $0x18] sm:$0xff] %v936
        %945 = vst [vmem:[%s597 + $0x20] sm:$0xff] %v937
        %946 = vst [vmem:[%s597 + $0x28] sm:$0xff] %v938
        %947 = vst [vmem:[%s597 + $0x30] sm:$0xff] %v939
        %948 = vst [vmem:[%s597 + $0x38] sm:$0xff] %v940
        %949 = vst [vmem:[%s604] sm:$0xff] %v925
        %950 = vst [vmem:[%s604 + $0x8] sm:$0xff] %v926
        %951 = vst [vmem:[%s604 + $0x10] sm:$0xff] %v927
        %952 = vst [vmem:[%s604 + $0x18] sm:$0xff] %v928
        %953 = vst [vmem:[%s604 + $0x20] sm:$0xff] %v929
        %954 = vst [vmem:[%s604 + $0x28] sm:$0xff] %v930
        %955 = vst [vmem:[%s604 + $0x30] sm:$0xff] %v931
        %956 = vst [vmem:[%s604 + $0x38] sm:$0xff] %v932
        %v957 = vpack.c.bf16 %v782, %v778
        %v958 = vpack.c.bf16 %v784, %v780
        %v959 = vpack.c.bf16 %v790, %v786
        %v960 = vpack.c.bf16 %v792, %v788
        %v965 = vunpack.c.l.b16 %v957
        %v966 = vunpack.c.l.b16 %v958
        %v967 = vunpack.c.h.b16 %v957
        %v968 = vunpack.c.h.b16 %v958
        %v969 = vunpack.c.l.b16 %v959
        %v970 = vunpack.c.l.b16 %v960
        %v971 = vunpack.c.h.b16 %v959
        %v972 = vunpack.c.h.b16 %v960
        %v973 = vpack.c.b16 %v966, %v965
        %v974 = vpack.c.b16 %v968, %v967
        %v975 = vpack.c.b16 %v970, %v969
        %v976 = vpack.c.b16 %v972, %v971
        %981 = vst [vmem:[%s611] sm:$0xff] %v973
        %982 = vst [vmem:[%s611 + $0x8] sm:$0xff] %v974
        %983 = vst [vmem:[%s611 + $0x10] sm:$0xff] %v975
        %984 = vst [vmem:[%s611 + $0x18] sm:$0xff] %v976
        %v985 = vpack.c.bf16 %v903, %v901
        %v986 = vpack.c.bf16 %v904, %v902
        %v987 = vpack.c.bf16 %v907, %v905
        %v988 = vpack.c.bf16 %v908, %v906
        %v993 = vunpack.c.l.b16 %v985
        %v994 = vunpack.c.l.b16 %v986
        %v995 = vunpack.c.h.b16 %v985
        %v996 = vunpack.c.h.b16 %v986
        %v997 = vunpack.c.l.b16 %v987
        %v998 = vunpack.c.l.b16 %v988
        %v999 = vunpack.c.h.b16 %v987
        %v1000 = vunpack.c.h.b16 %v988
        %v1001 = vpack.c.b16 %v994, %v993
        %v1002 = vpack.c.b16 %v996, %v995
        %v1003 = vpack.c.b16 %v998, %v997
        %v1004 = vpack.c.b16 %v1000, %v999
        %1009 = vst [vmem:[%s618] sm:$0xff] %v1001
        %1010 = vst [vmem:[%s618 + $0x8] sm:$0xff] %v1002
        %1011 = vst [vmem:[%s618 + $0x10] sm:$0xff] %v1003
        %1012 = vst [vmem:[%s618 + $0x18] sm:$0xff] %v1004
        %s1013 = sand.u32 %s250, 1
        %s1014 = scalar_lea.sflag [#allocation4], %s1013
        %s1015 = sand.u32 %s250, 1
        %s1016 = smul.addr %s1015, 64
        %s1017 = scalar_lea.vmem [#allocation11], %s1016
        %s1018 = sand.u32 %s40, 1
        %s1019 = scalar_lea.sflag [#allocation13], %s1018
        %s1020 = sand.u32 %s278, 1
        %s1021 = smul.addr %s1020, 64
        %s1022 = scalar_lea.vmem [#allocation12], %s1021
        %s1023 = sand.u32 %s40, 1
        %s1024 = scalar_lea.sflag [#allocation13], %s1023
        %s1025 = sand.u32 %s306, 1
        %s1026 = smul.addr %s1025, 32
        %s1027 = scalar_lea.vmem [#allocation14], %s1026
        %s1028 = sand.u32 %s334, 1
        %s1029 = scalar_lea.sflag [#allocation16], %s1028
        %s1030 = sand.u32 %s334, 1
        %s1031 = smul.addr %s1030, 32
        %s1032 = scalar_lea.vmem [#allocation15], %s1031
        // Predicated region
        $region69: #{tpu_custom_call.1} parent=47 // pred_check
          %p1033 = pneg %p260
        $region70: #{tpu_custom_call.1} parent=47 // pred_check_branch
          %1035 = sbr.rel (%p1033) target = $region72
        $region71: #{tpu_custom_call.1} parent=47 // pred_region
          %s1036 = smul.u32 4, %s45
          %s1037 = smul.u32 2, %s44
          %s1039 = ssub.s32 1024, 1024
          %1040 = vsyncadd %s1014, %s1039
          %s1041 = smul.addr %s1036, 4
          %s1042 = sadd.s32 %s1037, %s1041
          %s1043 = smul.addr %s1042, 128
          %s1044 = scalar_lea.hbm %s7, %s1043
          %s1045 = sshll.u32 %s1017, 4
          %s1046 = int_to_ptr.vmem [resolvable:$true] %s1045
          %1051 = dma.vmem_to_hbm [thread:$0]  %s1046, 1024, %s1044, %s1014, 256, 512, 16
        $region72: #{tpu_custom_call.1} parent=47 // pred_fallthru
          _
        // Predicated region
        $region73: #{tpu_custom_call.1} parent=47 // pred_check
          %p1052 = pneg %p288
        $region74: #{tpu_custom_call.1} parent=47 // pred_check_branch
          %1054 = sbr.rel (%p1052) target = $region76
        $region75: #{tpu_custom_call.1} parent=47 // pred_region
          %s1055 = smul.u32 4, %s45
          %s1056 = smul.u32 2, %s44
          %s1058 = ssub.s32 1024, 1024
          %1059 = vsyncadd %s1019, %s1058
          %s1060 = smul.addr %s1055, 4
          %s1061 = sadd.s32 %s1056, %s1060
          %s1062 = smul.addr %s1061, 128
          %s1063 = scalar_lea.hbm %s8, %s1062
          %s1064 = sshll.u32 %s1022, 4
          %s1065 = int_to_ptr.vmem [resolvable:$true] %s1064
          %1070 = dma.vmem_to_hbm [thread:$0]  %s1065, 1024, %s1063, %s1019, 256, 512, 16
        $region76: #{tpu_custom_call.1} parent=47 // pred_fallthru
          _
        // Predicated region
        $region77: #{tpu_custom_call.1} parent=47 // pred_check
          %p1071 = pneg %p316
        $region78: #{tpu_custom_call.1} parent=47 // pred_check_branch
          %1073 = sbr.rel (%p1071) target = $region80
        $region79: #{tpu_custom_call.1} parent=47 // pred_region
          %s1074 = smul.u32 4, %s45
          %s1075 = smul.u32 2, %s44
          %s1077 = ssub.s32 512, 512
          %1078 = vsyncadd %s1024, %s1077
          %s1079 = smul.addr %s1074, 4
          %s1080 = sadd.s32 %s1075, %s1079
          %s1081 = smul.addr %s1080, 64
          %s1082 = scalar_lea.hbm %s9, %s1081
          %s1083 = sshll.u32 %s1027, 4
          %s1084 = int_to_ptr.vmem [resolvable:$true] %s1083
          %1089 = dma.vmem_to_hbm [thread:$0]  %s1084, 512, %s1082, %s1024, 128, 256, 8
        $region80: #{tpu_custom_call.1} parent=47 // pred_fallthru
          _
        // Predicated region
        $region81: #{tpu_custom_call.1} parent=47 // pred_check
          %p1090 = pneg %p344
        $region82: #{tpu_custom_call.1} parent=47 // pred_check_branch
          %1092 = sbr.rel (%p1090) target = $region84
        $region83: #{tpu_custom_call.1} parent=47 // pred_region
          %s1093 = smul.u32 4, %s45
          %s1094 = smul.u32 2, %s44
          %s1096 = ssub.s32 512, 512
          %1097 = vsyncadd %s1029, %s1096
          %s1098 = smul.addr %s1093, 4
          %s1099 = sadd.s32 %s1094, %s1098
          %s1100 = smul.addr %s1099, 64
          %s1101 = scalar_lea.hbm %s10, %s1100
          %s1102 = sshll.u32 %s1032, 4
          %s1103 = int_to_ptr.vmem [resolvable:$true] %s1102
          %1108 = dma.vmem_to_hbm [thread:$0]  %s1103, 512, %s1101, %s1029, 128, 256, 8
        $region84: #{tpu_custom_call.1} parent=47 // pred_fallthru
          _
      $region48: #{tpu_custom_call.1} parent=5 // pred_fallthru
        _
      %p1109 = scmp.le.s32.totalorder 2, %s35
      // Predicated region
      $region85: #{tpu_custom_call.1} parent=5 // pred_check
        %p1110 = pneg %p1109
      $region86: #{tpu_custom_call.1} parent=5 // pred_check_branch
        %1112 = sbr.rel (%p1110) target = $region88
      $region87: #{tpu_custom_call.1} parent=5 // pred_region
        %s1113 = ssub.s32 %s35, 2
        // Predicated region
        $region89: #{tpu_custom_call.1} parent=87 // pred_check
          %p1114 = pneg %p266
        $region90: #{tpu_custom_call.1} parent=87 // pred_check_branch
          %1116 = sbr.rel (%p1114) target = $region92
        $region91: #{tpu_custom_call.1} parent=87 // pred_region
          %s1117 = sand.u32 %s251, 1
          %s1118 = scalar_lea.sflag [#allocation4], %s1117
          %s1119 = sand.u32 %s251, 1
          %s1120 = smul.addr %s1119, 64
          %s1121 = scalar_lea.vmem [#allocation11], %s1120
          %1122 = dma.done %s1118, 1024
        $region92: #{tpu_custom_call.1} parent=87 // pred_fallthru
          _
        // Predicated region
        $region93: #{tpu_custom_call.1} parent=87 // pred_check
          %p1123 = pneg %p294
        $region94: #{tpu_custom_call.1} parent=87 // pred_check_branch
          %1125 = sbr.rel (%p1123) target = $region96
        $region95: #{tpu_custom_call.1} parent=87 // pred_region
          %s1126 = sand.u32 %s41, 1
          %s1127 = scalar_lea.sflag [#allocation13], %s1126
          %s1128 = sand.u32 %s279, 1
          %s1129 = smul.addr %s1128, 64
          %s1130 = scalar_lea.vmem [#allocation12], %s1129
          %1131 = dma.done %s1127, 1024
        $region96: #{tpu_custom_call.1} parent=87 // pred_fallthru
          _
        // Predicated region
        $region97: #{tpu_custom_call.1} parent=87 // pred_check
          %p1132 = pneg %p322
        $region98: #{tpu_custom_call.1} parent=87 // pred_check_branch
          %1134 = sbr.rel (%p1132) target = $region100
        $region99: #{tpu_custom_call.1} parent=87 // pred_region
          %s1135 = sand.u32 %s41, 1
          %s1136 = scalar_lea.sflag [#allocation13], %s1135
          %s1137 = sand.u32 %s307, 1
          %s1138 = smul.addr %s1137, 32
          %s1139 = scalar_lea.vmem [#allocation14], %s1138
          %1140 = dma.done %s1136, 512
        $region100: #{tpu_custom_call.1} parent=87 // pred_fallthru
          _
        // Predicated region
        $region101: #{tpu_custom_call.1} parent=87 // pred_check
          %p1141 = pneg %p350
        $region102: #{tpu_custom_call.1} parent=87 // pred_check_branch
          %1143 = sbr.rel (%p1141) target = $region104
        $region103: #{tpu_custom_call.1} parent=87 // pred_region
          %s1144 = sand.u32 %s335, 1
          %s1145 = scalar_lea.sflag [#allocation16], %s1144
          %s1146 = sand.u32 %s335, 1
          %s1147 = smul.addr %s1146, 32
          %s1148 = scalar_lea.vmem [#allocation15], %s1147
          %1149 = dma.done %s1145, 512
        $region104: #{tpu_custom_call.1} parent=87 // pred_fallthru
          _
      $region88: #{tpu_custom_call.1} parent=5 // pred_fallthru
        _
    $region6: #{tpu_custom_call.1} parent=1 // loop_footer
      %s39 = sadd.s32 1, %s35
    $region7: #{tpu_custom_call.1} parent=1 // loop_footer_branch
      %34 = sbr.rel target = $region3
    $region8: #{tpu_custom_call.1} parent=1 // loop_exit
      _
    %1150 = vsyncpa [#allocation3], 1
    %s1151 = scalar_lea.sflag [#allocation3], 1
    %1152 = vsyncpa %s1151, 1
    %1153 = vsyncpa [#allocation6], 1
    %s1154 = scalar_lea.sflag [#allocation6], 1
    %1155 = vsyncpa %s1154, 1
    %1156 = vsyncpa [#allocation9], 1
    %s1157 = scalar_lea.sflag [#allocation9], 1
    %1158 = vsyncpa %s1157, 1
    %1159 = vsyncpa [#allocation4], 1
    %s1160 = scalar_lea.sflag [#allocation4], 1
    %1161 = vsyncpa %s1160, 1
    %1162 = vsyncpa [#allocation13], 1
    %s1163 = scalar_lea.sflag [#allocation13], 1
    %1164 = vsyncpa %s1163, 1
    %1165 = vsyncpa [#allocation16], 1
    %s1166 = scalar_lea.sflag [#allocation16], 1
    %1167 = vsyncpa %s1166, 1

</llo_original>
